<compile_context>
chip_gen: v5e
topology: v5e:2x2
jax: 0.10.0
libtpu: 0.0.40
codegen_flags: <defaults>
</compile_context>

<pallas_src>
import jax
import jax.numpy as jnp
from jax.experimental import pallas as pl
from jax.experimental.pallas import tpu as pltpu


def _make_skconv_kernel(C, hw_real, hw_pad):
    inv_hw = 1.0 / float(hw_real)

    def kernel(p5_ref, p3_ref, w5_ref, b5_ref, w3_ref, b3_ref,
               wse_ref, bse_ref, wex1_ref, bex1_ref, wex2_ref, bex2_ref,
               o_ref):
        # Branch 1: 5x5 conv (matmul over im2col patches) + folded BN + ReLU.
        conv1 = jnp.dot(w5_ref[...], p5_ref[...],
                        preferred_element_type=jnp.float32)
        conv1 = jnp.maximum(conv1 + b5_ref[...], 0.0)           # (C, HWp)

        # Branch 2: 3x3 conv + folded BN + ReLU.
        conv2 = jnp.dot(w3_ref[...], p3_ref[...],
                        preferred_element_type=jnp.float32)
        conv2 = jnp.maximum(conv2 + b3_ref[...], 0.0)           # (C, HWp)

        # U = sum of branches; global average pool over the real HW columns.
        u = conv1 + conv2
        if hw_pad > hw_real:  # static: mask zero-padded lanes before pooling
            col = jax.lax.broadcasted_iota(jnp.int32, u.shape, 1)
            u = jnp.where(col < hw_real, u, 0.0)
        s = jnp.sum(u, axis=1, keepdims=True) * inv_hw          # (C, 1)

        # Squeeze: 1x1 conv -> BN -> ReLU (folded) on the pooled vector.
        z = jnp.dot(wse_ref[...], s, preferred_element_type=jnp.float32)
        z = jnp.maximum(z + bse_ref[...], 0.0)                  # (Cr, 1)

        # Excite: two 1x1 convs -> per-channel 2-way softmax over the branches.
        a1 = jnp.dot(wex1_ref[...], z,
                     preferred_element_type=jnp.float32) + bex1_ref[...]
        a2 = jnp.dot(wex2_ref[...], z,
                     preferred_element_type=jnp.float32) + bex2_ref[...]
        m = jnp.maximum(a1, a2)
        e1 = jnp.exp(a1 - m)
        e2 = jnp.exp(a2 - m)
        inv = pl.reciprocal(e1 + e2, approx=True)               # EUP slot
        att1 = e1 * inv
        att2 = e2 * inv

        # V = attention-weighted fusion of the two branches (lane-dense store).
        o_ref[...] = (att1 * conv1 + att2 * conv2).astype(o_ref.dtype)

    return kernel


def _fold_conv_bn(w, b, gamma, beta, mean, var, eps=1e-5):
    """Fold eval-mode BatchNorm2d into a conv weight/bias (exact)."""
    scale = gamma / jnp.sqrt(var + eps)
    w_eff = w * scale[:, None, None, None]
    b_eff = (b - mean) * scale + beta
    return w_eff, b_eff


def _im2col(x, k, pad):
    """x: (B, C, H, W) -> (B, k*k*C, H*W) patch matrix (tap-major, channel-minor)."""
    B, C, H, W = x.shape
    xp = jnp.pad(x, ((0, 0), (0, 0), (pad, pad), (pad, pad)))
    taps = []
    for ky in range(k):
        for kx in range(k):
            taps.append(xp[:, :, ky:ky + H, kx:kx + W].reshape(B, C, H * W))
    return jnp.concatenate(taps, axis=1)


def _conv_weight_to_matrix(w):
    """(O, I, kh, kw) -> (O, kh*kw*I) matching the _im2col row order."""
    O, I, kh, kw = w.shape
    return jnp.transpose(w, (0, 2, 3, 1)).reshape(O, kh * kw * I)


def skconv_forward(x, params):
    """x: (B, C, H, W) NCHW. Returns (B, C, H, W) = SKConv(x) (eval-mode BN)."""
    B, C, H, W = x.shape
    HW = H * W
    HW_PAD = ((HW + 127) // 128) * 128   # lane-dense last dim

    # Fold eval-mode BN into conv weights / biases (inference semantics).
    w5, b5 = _fold_conv_bn(params["w5"], params["b5"], *params["bn1"])
    w3, b3 = _fold_conv_bn(params["w3"], params["b3"], *params["bn2"])
    wse, bse = _fold_conv_bn(params["wse"], params["bse"], *params["bnse"])
    Cr = wse.shape[0]

    w5m = _conv_weight_to_matrix(w5)                 # (C, 25*C)
    w3m = _conv_weight_to_matrix(w3)                 # (C, 9*C)
    wsem = wse.reshape(Cr, C)                        # (Cr, C)
    wex1m = params["wex1"].reshape(C, Cr)            # (C, Cr)
    wex2m = params["wex2"].reshape(C, Cr)            # (C, Cr)

    # im2col patch matrices (layout plumbing; FLOPs run inside the kernel).
    p5 = _im2col(x, 5, 2)                            # (B, 25*C, HW)
    p3 = _im2col(x, 3, 1)                            # (B, 9*C, HW)
    if HW_PAD > HW:
        padw = ((0, 0), (0, 0), (0, HW_PAD - HW))
        p5 = jnp.pad(p5, padw)
        p3 = jnp.pad(p3, padw)

    kernel = _make_skconv_kernel(C, HW, HW_PAD)

    flops = 2 * B * HW_PAD * C * C * (25 + 9) + 6 * B * C * Cr
    bytes_accessed = 4 * B * (25 * C + 9 * C + C) * HW_PAD + 4 * (w5m.size + w3m.size)
    cost = pl.CostEstimate(flops=flops, transcendentals=2 * B * C,
                           bytes_accessed=bytes_accessed)

    grid_spec = pltpu.PrefetchScalarGridSpec(
        num_scalar_prefetch=0,
        grid=(B,),
        in_specs=[
            pl.BlockSpec((pl.Squeezed(), 25 * C, HW_PAD), lambda b: (b, 0, 0)),
            pl.BlockSpec((pl.Squeezed(), 9 * C, HW_PAD), lambda b: (b, 0, 0)),
            pl.BlockSpec((C, 25 * C), lambda b: (0, 0)),
            pl.BlockSpec((C, 1), lambda b: (0, 0)),
            pl.BlockSpec((C, 9 * C), lambda b: (0, 0)),
            pl.BlockSpec((C, 1), lambda b: (0, 0)),
            pl.BlockSpec((Cr, C), lambda b: (0, 0)),
            pl.BlockSpec((Cr, 1), lambda b: (0, 0)),
            pl.BlockSpec((C, Cr), lambda b: (0, 0)),
            pl.BlockSpec((C, 1), lambda b: (0, 0)),
            pl.BlockSpec((C, Cr), lambda b: (0, 0)),
            pl.BlockSpec((C, 1), lambda b: (0, 0)),
        ],
        out_specs=pl.BlockSpec((pl.Squeezed(), C, HW_PAD), lambda b: (b, 0, 0)),
    )

    out = pl.pallas_call(
        kernel,
        out_shape=jax.ShapeDtypeStruct((B, C, HW_PAD), x.dtype),
        grid_spec=grid_spec,
        compiler_params=pltpu.CompilerParams(
            dimension_semantics=("parallel",)),
        cost_estimate=cost,
    )(p5, p3,
      w5m, b5.reshape(C, 1),
      w3m, b3.reshape(C, 1),
      wsem, bse.reshape(Cr, 1),
      wex1m, params["bex1"].reshape(C, 1),
      wex2m, params["bex2"].reshape(C, 1))

    return out[:, :, :HW].reshape(B, C, H, W)


# ----------------------------- pure-JAX reference -----------------------------

def _conv2d(x, w, b, pad):
    out = jax.lax.conv_general_dilated(
        x, w, window_strides=(1, 1), padding=[(pad, pad), (pad, pad)],
        dimension_numbers=("NCHW", "OIHW", "NCHW"))
    return out + b[None, :, None, None]


def _bn_eval(x, gamma, beta, mean, var, eps=1e-5):
    return ((x - mean[None, :, None, None])
            / jnp.sqrt(var[None, :, None, None] + eps)
            * gamma[None, :, None, None] + beta[None, :, None, None])


def skconv_reference(x, params):
    conv1 = jax.nn.relu(_bn_eval(_conv2d(x, params["w5"], params["b5"], 2),
                                 *params["bn1"]))
    conv2 = jax.nn.relu(_bn_eval(_conv2d(x, params["w3"], params["b3"], 1),
                                 *params["bn2"]))
    u = conv1 + conv2
    s = jnp.mean(u, axis=(2, 3), keepdims=True)
    z = jax.nn.relu(_bn_eval(_conv2d(s, params["wse"], params["bse"], 0),
                             *params["bnse"]))
    a1 = _conv2d(z, params["wex1"], params["bex1"], 0)
    a2 = _conv2d(z, params["wex2"], params["bex2"], 0)
    att = jax.nn.softmax(jnp.stack([a1, a2], axis=1), axis=1)
    return att[:, 0] * conv1 + att[:, 1] * conv2


if __name__ == "__main__":
    key = jax.random.PRNGKey(0)
    B, C, H, W = 2, 4, 16, 16
    reduction = 2
    Cr = C // reduction

    keys = jax.random.split(key, 9)
    x = jax.random.normal(keys[0], (B, C, H, W), dtype=jnp.float32)

    def init_conv(k, co, ci, kh, kw, scale=0.1):
        kw_, kb_ = jax.random.split(k)
        w = scale * jax.random.normal(kw_, (co, ci, kh, kw), dtype=jnp.float32)
        b = scale * jax.random.normal(kb_, (co,), dtype=jnp.float32)
        return w, b

    def init_bn(k, c):
        k1, k2, k3, k4 = jax.random.split(k, 4)
        gamma = 1.0 + 0.1 * jax.random.normal(k1, (c,), dtype=jnp.float32)
        beta = 0.1 * jax.random.normal(k2, (c,), dtype=jnp.float32)
        mean = 0.1 * jax.random.normal(k3, (c,), dtype=jnp.float32)
        var = jax.random.uniform(k4, (c,), dtype=jnp.float32,
                                 minval=0.5, maxval=1.5)
        return gamma, beta, mean, var

    w5, b5 = init_conv(keys[1], C, C, 5, 5)
    w3, b3 = init_conv(keys[2], C, C, 3, 3)
    wse, bse = init_conv(keys[3], Cr, C, 1, 1)
    wex1, bex1 = init_conv(keys[4], C, Cr, 1, 1)
    wex2, bex2 = init_conv(keys[5], C, Cr, 1, 1)

    params = dict(
        w5=w5, b5=b5, bn1=init_bn(keys[6], C),
        w3=w3, b3=b3, bn2=init_bn(keys[7], C),
        wse=wse, bse=bse, bnse=init_bn(keys[8], Cr),
        wex1=wex1, bex1=bex1, wex2=wex2, bex2=bex2)

    out = skconv_forward(x, params)
    jax.block_until_ready(out)
    assert out.shape == (B, C, H, W)

    ref = skconv_reference(x, params)
    # rtol covers the EUP approx-reciprocal in the 2-way softmax (pure relative
    # scaling of V); everything else matches to f32 accumulation noise.
    assert jnp.allclose(out, ref, atol=1e-3, rtol=1e-2), (
        "max abs err = %f" % float(jnp.max(jnp.abs(out - ref))))

    print("KERNEL_OK")
</pallas_src>

<mosaic_0001>
module attributes {stable_mosaic.version = 11 : i64} {
  func.func @kernel(%arg0: i32, %arg1: memref<1x100x256xf32, #tpu.memory_space<vmem>>, %arg2: memref<1x36x256xf32, #tpu.memory_space<vmem>>, %arg3: memref<4x100xf32, #tpu.memory_space<vmem>>, %arg4: memref<4x1xf32, #tpu.memory_space<vmem>>, %arg5: memref<4x36xf32, #tpu.memory_space<vmem>>, %arg6: memref<4x1xf32, #tpu.memory_space<vmem>>, %arg7: memref<2x4xf32, #tpu.memory_space<vmem>>, %arg8: memref<2x1xf32, #tpu.memory_space<vmem>>, %arg9: memref<4x2xf32, #tpu.memory_space<vmem>>, %arg10: memref<4x1xf32, #tpu.memory_space<vmem>>, %arg11: memref<4x2xf32, #tpu.memory_space<vmem>>, %arg12: memref<4x1xf32, #tpu.memory_space<vmem>>, %arg13: memref<1x4x256xf32, #tpu.memory_space<vmem>>) attributes {dimension_semantics = [#tpu.dimension_semantics<parallel>], iteration_bounds = array<i64: 2>, scalar_prefetch = 0 : i64, scratch_operands = 0 : i64, tpu.core_type = #tpu.core_type<tc>, window_params = [{transform_indices = @transform_0, window_bounds = array<i64: 1, 100, 256>}, {transform_indices = @transform_1, window_bounds = array<i64: 1, 36, 256>}, {pipeline_mode = #tpu.pipeline_mode<synchronous>, transform_indices = @transform_2, window_bounds = array<i64: 4, 100>}, {pipeline_mode = #tpu.pipeline_mode<synchronous>, transform_indices = @transform_3, window_bounds = array<i64: 4, 1>}, {pipeline_mode = #tpu.pipeline_mode<synchronous>, transform_indices = @transform_4, window_bounds = array<i64: 4, 36>}, {pipeline_mode = #tpu.pipeline_mode<synchronous>, transform_indices = @transform_5, window_bounds = array<i64: 4, 1>}, {pipeline_mode = #tpu.pipeline_mode<synchronous>, transform_indices = @transform_6, window_bounds = array<i64: 2, 4>}, {pipeline_mode = #tpu.pipeline_mode<synchronous>, transform_indices = @transform_7, window_bounds = array<i64: 2, 1>}, {pipeline_mode = #tpu.pipeline_mode<synchronous>, transform_indices = @transform_8, window_bounds = array<i64: 4, 2>}, {pipeline_mode = #tpu.pipeline_mode<synchronous>, transform_indices = @transform_9, window_bounds = array<i64: 4, 1>}, {pipeline_mode = #tpu.pipeline_mode<synchronous>, transform_indices = @transform_10, window_bounds = array<i64: 4, 2>}, {pipeline_mode = #tpu.pipeline_mode<synchronous>, transform_indices = @transform_11, window_bounds = array<i64: 4, 1>}, {transform_indices = @transform_12, window_bounds = array<i64: 1, 4, 256>}]} {
    %c0 = arith.constant 0 : index
    %c0_0 = arith.constant 0 : index
    %0 = vector.load %arg3[%c0, %c0_0] : memref<4x100xf32, #tpu.memory_space<vmem>>, vector<4x100xf32>
    %c0_1 = arith.constant 0 : index
    %c0_2 = arith.constant 0 : index
    %c0_3 = arith.constant 0 : index
    %1 = vector.load %arg1[%c0_1, %c0_2, %c0_3] : memref<1x100x256xf32, #tpu.memory_space<vmem>>, vector<1x100x256xf32>
    %2 = vector.shape_cast %1 : vector<1x100x256xf32> to vector<100x256xf32>
    %cst = arith.constant dense<0.000000e+00> : vector<4x256xf32>
    %3 = tpu.matmul %0, %2, %cst {dimension_numbers = #tpu.dot_dimension_numbers<[1], [0], [0], [1], [0, 0, 1, 1], [], []>} : vector<4x100xf32>, vector<100x256xf32>, vector<4x256xf32> -> vector<4x256xf32>
    %c0_4 = arith.constant 0 : index
    %c0_5 = arith.constant 0 : index
    %4 = vector.load %arg4[%c0_4, %c0_5] : memref<4x1xf32, #tpu.memory_space<vmem>>, vector<4x1xf32>
    %5 = vector.broadcast %4 : vector<4x1xf32> to vector<4x256xf32>
    %6 = arith.addf %3, %5 : vector<4x256xf32>
    %cst_6 = arith.constant 0.000000e+00 : f32
    %7 = vector.broadcast %cst_6 : f32 to vector<4x256xf32>
    %8 = arith.maximumf %6, %7 : vector<4x256xf32>
    %c0_7 = arith.constant 0 : index
    %c0_8 = arith.constant 0 : index
    %9 = vector.load %arg5[%c0_7, %c0_8] : memref<4x36xf32, #tpu.memory_space<vmem>>, vector<4x36xf32>
    %c0_9 = arith.constant 0 : index
    %c0_10 = arith.constant 0 : index
    %c0_11 = arith.constant 0 : index
    %10 = vector.load %arg2[%c0_9, %c0_10, %c0_11] : memref<1x36x256xf32, #tpu.memory_space<vmem>>, vector<1x36x256xf32>
    %11 = vector.shape_cast %10 : vector<1x36x256xf32> to vector<36x256xf32>
    %cst_12 = arith.constant dense<0.000000e+00> : vector<4x256xf32>
    %12 = tpu.matmul %9, %11, %cst_12 {dimension_numbers = #tpu.dot_dimension_numbers<[1], [0], [0], [1], [0, 0, 1, 1], [], []>} : vector<4x36xf32>, vector<36x256xf32>, vector<4x256xf32> -> vector<4x256xf32>
    %c0_13 = arith.constant 0 : index
    %c0_14 = arith.constant 0 : index
    %13 = vector.load %arg6[%c0_13, %c0_14] : memref<4x1xf32, #tpu.memory_space<vmem>>, vector<4x1xf32>
    %14 = vector.broadcast %13 : vector<4x1xf32> to vector<4x256xf32>
    %15 = arith.addf %12, %14 : vector<4x256xf32>
    %cst_15 = arith.constant 0.000000e+00 : f32
    %16 = vector.broadcast %cst_15 : f32 to vector<4x256xf32>
    %17 = arith.maximumf %15, %16 : vector<4x256xf32>
    %18 = arith.addf %8, %17 : vector<4x256xf32>
    %cst_16 = arith.constant dense<0.000000e+00> : vector<4xf32>
    %19 = vector.multi_reduction <add>, %18, %cst_16 [1] : vector<4x256xf32> to vector<4xf32>
    %20 = vector.shape_cast %19 : vector<4xf32> to vector<4x1xf32>
    %cst_17 = arith.constant 3.906250e-03 : f32
    %21 = vector.broadcast %cst_17 : f32 to vector<4x1xf32>
    %22 = arith.mulf %20, %21 : vector<4x1xf32>
    %c0_18 = arith.constant 0 : index
    %c0_19 = arith.constant 0 : index
    %23 = vector.load %arg7[%c0_18, %c0_19] : memref<2x4xf32, #tpu.memory_space<vmem>>, vector<2x4xf32>
    %cst_20 = arith.constant dense<0.000000e+00> : vector<2x1xf32>
    %24 = tpu.matmul %23, %22, %cst_20 {dimension_numbers = #tpu.dot_dimension_numbers<[1], [0], [0], [1], [0, 0, 1, 1], [], []>} : vector<2x4xf32>, vector<4x1xf32>, vector<2x1xf32> -> vector<2x1xf32>
    %c0_21 = arith.constant 0 : index
    %c0_22 = arith.constant 0 : index
    %25 = vector.load %arg8[%c0_21, %c0_22] : memref<2x1xf32, #tpu.memory_space<vmem>>, vector<2x1xf32>
    %26 = arith.addf %24, %25 : vector<2x1xf32>
    %cst_23 = arith.constant 0.000000e+00 : f32
    %27 = vector.broadcast %cst_23 : f32 to vector<2x1xf32>
    %28 = arith.maximumf %26, %27 : vector<2x1xf32>
    %c0_24 = arith.constant 0 : index
    %c0_25 = arith.constant 0 : index
    %29 = vector.load %arg9[%c0_24, %c0_25] : memref<4x2xf32, #tpu.memory_space<vmem>>, vector<4x2xf32>
    %cst_26 = arith.constant dense<0.000000e+00> : vector<4x1xf32>
    %30 = tpu.matmul %29, %28, %cst_26 {dimension_numbers = #tpu.dot_dimension_numbers<[1], [0], [0], [1], [0, 0, 1, 1], [], []>} : vector<4x2xf32>, vector<2x1xf32>, vector<4x1xf32> -> vector<4x1xf32>
    %c0_27 = arith.constant 0 : index
    %c0_28 = arith.constant 0 : index
    %31 = vector.load %arg10[%c0_27, %c0_28] : memref<4x1xf32, #tpu.memory_space<vmem>>, vector<4x1xf32>
    %32 = arith.addf %30, %31 : vector<4x1xf32>
    %c0_29 = arith.constant 0 : index
    %c0_30 = arith.constant 0 : index
    %33 = vector.load %arg11[%c0_29, %c0_30] : memref<4x2xf32, #tpu.memory_space<vmem>>, vector<4x2xf32>
    %cst_31 = arith.constant dense<0.000000e+00> : vector<4x1xf32>
    %34 = tpu.matmul %33, %28, %cst_31 {dimension_numbers = #tpu.dot_dimension_numbers<[1], [0], [0], [1], [0, 0, 1, 1], [], []>} : vector<4x2xf32>, vector<2x1xf32>, vector<4x1xf32> -> vector<4x1xf32>
    %c0_32 = arith.constant 0 : index
    %c0_33 = arith.constant 0 : index
    %35 = vector.load %arg12[%c0_32, %c0_33] : memref<4x1xf32, #tpu.memory_space<vmem>>, vector<4x1xf32>
    %36 = arith.addf %34, %35 : vector<4x1xf32>
    %37 = arith.maximumf %32, %36 : vector<4x1xf32>
    %38 = arith.subf %32, %37 : vector<4x1xf32>
    %39 = math.exp %38 : vector<4x1xf32>
    %40 = arith.subf %36, %37 : vector<4x1xf32>
    %41 = math.exp %40 : vector<4x1xf32>
    %42 = arith.addf %39, %41 : vector<4x1xf32>
    %43 = tpu.reciprocal %42 {approx = true} : vector<4x1xf32> -> vector<4x1xf32>
    %44 = arith.mulf %39, %43 : vector<4x1xf32>
    %45 = arith.mulf %41, %43 : vector<4x1xf32>
    %46 = vector.broadcast %44 : vector<4x1xf32> to vector<4x256xf32>
    %47 = arith.mulf %46, %8 : vector<4x256xf32>
    %48 = vector.broadcast %45 : vector<4x1xf32> to vector<4x256xf32>
    %49 = arith.mulf %48, %17 : vector<4x256xf32>
    %50 = arith.addf %47, %49 : vector<4x256xf32>
    %c0_34 = arith.constant 0 : index
    %c0_35 = arith.constant 0 : index
    %c0_36 = arith.constant 0 : index
    %51 = vector.load %arg13[%c0_34, %c0_35, %c0_36] : memref<1x4x256xf32, #tpu.memory_space<vmem>>, vector<1x4x256xf32>
    %52 = vector.shape_cast %51 : vector<1x4x256xf32> to vector<4x256xf32>
    %53 = vector.shape_cast %50 : vector<4x256xf32> to vector<1x4x256xf32>
    tpu.vector_store %arg13[%c0_34, %c0_35, %c0_36], %53 {strides = array<i32>} : memref<1x4x256xf32, #tpu.memory_space<vmem>>, vector<1x4x256xf32>,
    return
  }
  func.func @transform_0(%arg0: i32) -> (i32, i32, i32) {
    %c0_i32 = arith.constant 0 : i32
    %c0_i32_0 = arith.constant 0 : i32
    %c0_i32_1 = arith.constant 0 : i32
    return %arg0, %c0_i32, %c0_i32_0 : i32, i32, i32
  }
  func.func @transform_1(%arg0: i32) -> (i32, i32, i32) {
    %c0_i32 = arith.constant 0 : i32
    %c0_i32_0 = arith.constant 0 : i32
    %c0_i32_1 = arith.constant 0 : i32
    return %arg0, %c0_i32, %c0_i32_0 : i32, i32, i32
  }
  func.func @transform_2(%arg0: i32) -> (i32, i32) {
    %c0_i32 = arith.constant 0 : i32
    %c0_i32_0 = arith.constant 0 : i32
    %c0_i32_1 = arith.constant 0 : i32
    return %c0_i32, %c0_i32_0 : i32, i32
  }
  func.func @transform_3(%arg0: i32) -> (i32, i32) {
    %c0_i32 = arith.constant 0 : i32
    %c0_i32_0 = arith.constant 0 : i32
    %c0_i32_1 = arith.constant 0 : i32
    return %c0_i32, %c0_i32_0 : i32, i32
  }
  func.func @transform_4(%arg0: i32) -> (i32, i32) {
    %c0_i32 = arith.constant 0 : i32
    %c0_i32_0 = arith.constant 0 : i32
    %c0_i32_1 = arith.constant 0 : i32
    return %c0_i32, %c0_i32_0 : i32, i32
  }
  func.func @transform_5(%arg0: i32) -> (i32, i32) {
    %c0_i32 = arith.constant 0 : i32
    %c0_i32_0 = arith.constant 0 : i32
    %c0_i32_1 = arith.constant 0 : i32
    return %c0_i32, %c0_i32_0 : i32, i32
  }
  func.func @transform_6(%arg0: i32) -> (i32, i32) {
    %c0_i32 = arith.constant 0 : i32
    %c0_i32_0 = arith.constant 0 : i32
    %c0_i32_1 = arith.constant 0 : i32
    return %c0_i32, %c0_i32_0 : i32, i32
  }
  func.func @transform_7(%arg0: i32) -> (i32, i32) {
    %c0_i32 = arith.constant 0 : i32
    %c0_i32_0 = arith.constant 0 : i32
    %c0_i32_1 = arith.constant 0 : i32
    return %c0_i32, %c0_i32_0 : i32, i32
  }
  func.func @transform_8(%arg0: i32) -> (i32, i32) {
    %c0_i32 = arith.constant 0 : i32
    %c0_i32_0 = arith.constant 0 : i32
    %c0_i32_1 = arith.constant 0 : i32
    return %c0_i32, %c0_i32_0 : i32, i32
  }
  func.func @transform_9(%arg0: i32) -> (i32, i32) {
    %c0_i32 = arith.constant 0 : i32
    %c0_i32_0 = arith.constant 0 : i32
    %c0_i32_1 = arith.constant 0 : i32
    return %c0_i32, %c0_i32_0 : i32, i32
  }
  func.func @transform_10(%arg0: i32) -> (i32, i32) {
    %c0_i32 = arith.constant 0 : i32
    %c0_i32_0 = arith.constant 0 : i32
    %c0_i32_1 = arith.constant 0 : i32
    return %c0_i32, %c0_i32_0 : i32, i32
  }
  func.func @transform_11(%arg0: i32) -> (i32, i32) {
    %c0_i32 = arith.constant 0 : i32
    %c0_i32_0 = arith.constant 0 : i32
    %c0_i32_1 = arith.constant 0 : i32
    return %c0_i32, %c0_i32_0 : i32, i32
  }
  func.func @transform_12(%arg0: i32) -> (i32, i32, i32) {
    %c0_i32 = arith.constant 0 : i32
    %c0_i32_0 = arith.constant 0 : i32
    %c0_i32_1 = arith.constant 0 : i32
    return %arg0, %c0_i32, %c0_i32_0 : i32, i32, i32
  }
}

</mosaic_0001>

<llo_original>
// kernel: tpu_custom_call.1
$region0: #{tpu_custom_call.1}
  #allocation0 [shape = 'u32[]', space=smem, size = 0x4, offset = 0x4, fixed_abs, tag = 'smem constant byte address 0x4 - core index']
  #allocation1 [shape = 'u32[72,128]{1,0:T(1,128)}', space=vmem, size = 0x9000, scoped, tag = 'internal scratch']
  %s0 = inlined_call_operand.vmem [shape: f32[2,100,256], index: 0, kind: input, shape index: {}]
  %s1 = inlined_call_operand.vmem [shape: f32[2,36,256], index: 1, kind: input, shape index: {}]
  %s2 = inlined_call_operand.vmem [shape: f32[4,100], index: 2, kind: input, shape index: {}]
  %s3 = inlined_call_operand.vmem [shape: f32[4,1], index: 3, kind: input, shape index: {}]
  %s4 = inlined_call_operand.vmem [shape: f32[4,36], index: 4, kind: input, shape index: {}]
  %s5 = inlined_call_operand.vmem [shape: f32[4,1], index: 5, kind: input, shape index: {}]
  %s6 = inlined_call_operand.vmem [shape: f32[2,4], index: 6, kind: input, shape index: {}]
  %s7 = inlined_call_operand.vmem [shape: f32[2,1], index: 7, kind: input, shape index: {}]
  %s8 = inlined_call_operand.vmem [shape: f32[4,2], index: 8, kind: input, shape index: {}]
  %s9 = inlined_call_operand.vmem [shape: f32[4,1], index: 9, kind: input, shape index: {}]
  %s10 = inlined_call_operand.vmem [shape: f32[4,2], index: 10, kind: input, shape index: {}]
  %s11 = inlined_call_operand.vmem [shape: f32[4,1], index: 11, kind: input, shape index: {}]
  %s12 = inlined_call_operand.hbm [shape: f32[2,4,256], index: 12, kind: output, shape index: {}]
  %s13 = sld [smem:[#allocation0]]
  $region81: #{tpu_custom_call.1} parent=0
    _
  %s15 = ssub.s32 1, %s13
  %s16 = scalar_select 0, %s15, %s13
  $region1: #{tpu_custom_call.1} parent=0
    #allocation2 [shape = 'u8[8192]{0}', space=vmem, size = 0x2000, scoped, tag = 'output window, operand 0']
    #allocation3 [shape = 's32[2]{0}', space=sflag, size = 0x8, scoped, tag = 'scoped memory for tpu_custom_call.1']
    %17 = vsyncpa [#allocation3], 0
    %s18 = scalar_lea.sflag [#allocation3], 1
    %19 = vsyncpa %s18, 0
    loop: start=0, step=1, limit=4
    $region2: #{tpu_custom_call.1} parent=1 // loop_pre_header
      _
    $region3: #{tpu_custom_call.1} parent=1 // loop_header
      %s21 = sphi 0, %s25
      %p22 = scmp.ge.s32.totalorder %s21, 4
      %s31 = sphi 0, %s33
      %s34 = sphi 0, %s31
      %s35 = sphi 0, %s34
      %s51 = sphi 0, %s35
      %s57 = sphi 0, %s59
      %s60 = sphi 0, %s57
      %s61 = sphi 0, %s60
      %s77 = sphi 0, %s61
      %s81 = sphi 0, %s81
      %s83 = sphi 0, %s81
      %s84 = sphi 0, %s83
      %s98 = sphi 0, %s84
      %s102 = sphi 0, %s102
      %s104 = sphi 0, %s102
      %s105 = sphi 0, %s104
      %s119 = sphi 0, %s105
      %s123 = sphi 0, %s123
      %s125 = sphi 0, %s123
      %s126 = sphi 0, %s125
      %s140 = sphi 0, %s126
      %s144 = sphi 0, %s144
      %s146 = sphi 0, %s144
      %s147 = sphi 0, %s146
      %s161 = sphi 0, %s147
      %s165 = sphi 0, %s165
      %s167 = sphi 0, %s165
      %s168 = sphi 0, %s167
      %s182 = sphi 0, %s168
      %s186 = sphi 0, %s186
      %s188 = sphi 0, %s186
      %s189 = sphi 0, %s188
      %s203 = sphi 0, %s189
      %s207 = sphi 0, %s207
      %s209 = sphi 0, %s207
      %s210 = sphi 0, %s209
      %s224 = sphi 0, %s210
      %s228 = sphi 0, %s228
      %s230 = sphi 0, %s228
      %s231 = sphi 0, %s230
      %s245 = sphi 0, %s231
      %s249 = sphi 0, %s249
      %s251 = sphi 0, %s249
      %s252 = sphi 0, %s251
      %s266 = sphi 0, %s252
      %s270 = sphi 0, %s270
      %s272 = sphi 0, %s270
      %s273 = sphi 0, %s272
      %s287 = sphi 0, %s273
      %s293 = sphi 0, %s295
      %s296 = sphi 0, %s293
      %s297 = sphi 0, %s296
      %s313 = sphi 0, %s297
    $region4: #{tpu_custom_call.1} parent=1 // loop_header_branch
      %24 = sbr.rel (%p22) target = $region8
    $region5: #{tpu_custom_call.1} parent=1 // loop_body
      %s26 = ssub.s32 %s21, 1
      %s27 = ssub.s32 %s21, 2
      %s28 = sadd.s32 %s21, 1
      %s29 = ssub.s32 %s21, %s28
      %p30 = scmp.eq.s32.totalorder %s29, 0
      %s32 = sadd.s32 %s31, 1
      %s33 = scalar_select %p30, %s31, %s32
      %p36 = pneg %p30
      %p37 = scmp.eq.s32.totalorder %s21, 1
      %p38 = por %p36, %p37
      %p39 = scmp.ne.s32.totalorder %s31, %s34
      %p40 = scmp.eq.s32.totalorder %s21, 0
      %p41 = por %p39, %p40
      %p42 = scmp.ne.s32.totalorder %s31, %s34
      %p43 = scmp.eq.s32.totalorder %s26, 1
      %p44 = por %p42, %p43
      %p45 = scmp.ne.s32.totalorder %s34, %s35
      %p46 = scmp.eq.s32.totalorder %s26, 0
      %p47 = por %p45, %p46
      %p48 = scmp.ne.s32.totalorder %s34, %s35
      %p49 = scmp.eq.s32.totalorder %s27, 1
      %p50 = por %p48, %p49
      %p52 = scmp.ne.s32.totalorder %s35, %s51
      %p53 = scmp.eq.s32.totalorder %s27, 0
      %p54 = por %p52, %p53
      %s55 = ssub.s32 %s21, %s28
      %p56 = scmp.eq.s32.totalorder %s55, 0
      %s58 = sadd.s32 %s57, 1
      %s59 = scalar_select %p56, %s57, %s58
      %p62 = pneg %p56
      %p63 = scmp.eq.s32.totalorder %s21, 1
      %p64 = por %p62, %p63
      %p65 = scmp.ne.s32.totalorder %s57, %s60
      %p66 = scmp.eq.s32.totalorder %s21, 0
      %p67 = por %p65, %p66
      %p68 = scmp.ne.s32.totalorder %s57, %s60
      %p69 = scmp.eq.s32.totalorder %s26, 1
      %p70 = por %p68, %p69
      %p71 = scmp.ne.s32.totalorder %s60, %s61
      %p72 = scmp.eq.s32.totalorder %s26, 0
      %p73 = por %p71, %p72
      %p74 = scmp.ne.s32.totalorder %s60, %s61
      %p75 = scmp.eq.s32.totalorder %s27, 1
      %p76 = por %p74, %p75
      %p78 = scmp.ne.s32.totalorder %s61, %s77
      %p79 = scmp.eq.s32.totalorder %s27, 0
      %p80 = por %p78, %p79
      %s82 = sadd.s32 %s81, 1
      %p85 = scmp.eq.s32.totalorder %s21, 1
      %p86 = scmp.ne.s32.totalorder %s81, %s83
      %p87 = scmp.eq.s32.totalorder %s21, 0
      %p88 = por %p86, %p87
      %p89 = scmp.ne.s32.totalorder %s81, %s83
      %p90 = scmp.eq.s32.totalorder %s26, 1
      %p91 = por %p89, %p90
      %p92 = scmp.ne.s32.totalorder %s83, %s84
      %p93 = scmp.eq.s32.totalorder %s26, 0
      %p94 = por %p92, %p93
      %p95 = scmp.ne.s32.totalorder %s83, %s84
      %p96 = scmp.eq.s32.totalorder %s27, 1
      %p97 = por %p95, %p96
      %p99 = scmp.ne.s32.totalorder %s84, %s98
      %p100 = scmp.eq.s32.totalorder %s27, 0
      %p101 = por %p99, %p100
      %s103 = sadd.s32 %s102, 1
      %p106 = scmp.eq.s32.totalorder %s21, 1
      %p107 = scmp.ne.s32.totalorder %s102, %s104
      %p108 = scmp.eq.s32.totalorder %s21, 0
      %p109 = por %p107, %p108
      %p110 = scmp.ne.s32.totalorder %s102, %s104
      %p111 = scmp.eq.s32.totalorder %s26, 1
      %p112 = por %p110, %p111
      %p113 = scmp.ne.s32.totalorder %s104, %s105
      %p114 = scmp.eq.s32.totalorder %s26, 0
      %p115 = por %p113, %p114
      %p116 = scmp.ne.s32.totalorder %s104, %s105
      %p117 = scmp.eq.s32.totalorder %s27, 1
      %p118 = por %p116, %p117
      %p120 = scmp.ne.s32.totalorder %s105, %s119
      %p121 = scmp.eq.s32.totalorder %s27, 0
      %p122 = por %p120, %p121
      %s124 = sadd.s32 %s123, 1
      %p127 = scmp.eq.s32.totalorder %s21, 1
      %p128 = scmp.ne.s32.totalorder %s123, %s125
      %p129 = scmp.eq.s32.totalorder %s21, 0
      %p130 = por %p128, %p129
      %p131 = scmp.ne.s32.totalorder %s123, %s125
      %p132 = scmp.eq.s32.totalorder %s26, 1
      %p133 = por %p131, %p132
      %p134 = scmp.ne.s32.totalorder %s125, %s126
      %p135 = scmp.eq.s32.totalorder %s26, 0
      %p136 = por %p134, %p135
      %p137 = scmp.ne.s32.totalorder %s125, %s126
      %p138 = scmp.eq.s32.totalorder %s27, 1
      %p139 = por %p137, %p138
      %p141 = scmp.ne.s32.totalorder %s126, %s140
      %p142 = scmp.eq.s32.totalorder %s27, 0
      %p143 = por %p141, %p142
      %s145 = sadd.s32 %s144, 1
      %p148 = scmp.eq.s32.totalorder %s21, 1
      %p149 = scmp.ne.s32.totalorder %s144, %s146
      %p150 = scmp.eq.s32.totalorder %s21, 0
      %p151 = por %p149, %p150
      %p152 = scmp.ne.s32.totalorder %s144, %s146
      %p153 = scmp.eq.s32.totalorder %s26, 1
      %p154 = por %p152, %p153
      %p155 = scmp.ne.s32.totalorder %s146, %s147
      %p156 = scmp.eq.s32.totalorder %s26, 0
      %p157 = por %p155, %p156
      %p158 = scmp.ne.s32.totalorder %s146, %s147
      %p159 = scmp.eq.s32.totalorder %s27, 1
      %p160 = por %p158, %p159
      %p162 = scmp.ne.s32.totalorder %s147, %s161
      %p163 = scmp.eq.s32.totalorder %s27, 0
      %p164 = por %p162, %p163
      %s166 = sadd.s32 %s165, 1
      %p169 = scmp.eq.s32.totalorder %s21, 1
      %p170 = scmp.ne.s32.totalorder %s165, %s167
      %p171 = scmp.eq.s32.totalorder %s21, 0
      %p172 = por %p170, %p171
      %p173 = scmp.ne.s32.totalorder %s165, %s167
      %p174 = scmp.eq.s32.totalorder %s26, 1
      %p175 = por %p173, %p174
      %p176 = scmp.ne.s32.totalorder %s167, %s168
      %p177 = scmp.eq.s32.totalorder %s26, 0
      %p178 = por %p176, %p177
      %p179 = scmp.ne.s32.totalorder %s167, %s168
      %p180 = scmp.eq.s32.totalorder %s27, 1
      %p181 = por %p179, %p180
      %p183 = scmp.ne.s32.totalorder %s168, %s182
      %p184 = scmp.eq.s32.totalorder %s27, 0
      %p185 = por %p183, %p184
      %s187 = sadd.s32 %s186, 1
      %p190 = scmp.eq.s32.totalorder %s21, 1
      %p191 = scmp.ne.s32.totalorder %s186, %s188
      %p192 = scmp.eq.s32.totalorder %s21, 0
      %p193 = por %p191, %p192
      %p194 = scmp.ne.s32.totalorder %s186, %s188
      %p195 = scmp.eq.s32.totalorder %s26, 1
      %p196 = por %p194, %p195
      %p197 = scmp.ne.s32.totalorder %s188, %s189
      %p198 = scmp.eq.s32.totalorder %s26, 0
      %p199 = por %p197, %p198
      %p200 = scmp.ne.s32.totalorder %s188, %s189
      %p201 = scmp.eq.s32.totalorder %s27, 1
      %p202 = por %p200, %p201
      %p204 = scmp.ne.s32.totalorder %s189, %s203
      %p205 = scmp.eq.s32.totalorder %s27, 0
      %p206 = por %p204, %p205
      %s208 = sadd.s32 %s207, 1
      %p211 = scmp.eq.s32.totalorder %s21, 1
      %p212 = scmp.ne.s32.totalorder %s207, %s209
      %p213 = scmp.eq.s32.totalorder %s21, 0
      %p214 = por %p212, %p213
      %p215 = scmp.ne.s32.totalorder %s207, %s209
      %p216 = scmp.eq.s32.totalorder %s26, 1
      %p217 = por %p215, %p216
      %p218 = scmp.ne.s32.totalorder %s209, %s210
      %p219 = scmp.eq.s32.totalorder %s26, 0
      %p220 = por %p218, %p219
      %p221 = scmp.ne.s32.totalorder %s209, %s210
      %p222 = scmp.eq.s32.totalorder %s27, 1
      %p223 = por %p221, %p222
      %p225 = scmp.ne.s32.totalorder %s210, %s224
      %p226 = scmp.eq.s32.totalorder %s27, 0
      %p227 = por %p225, %p226
      %s229 = sadd.s32 %s228, 1
      %p232 = scmp.eq.s32.totalorder %s21, 1
      %p233 = scmp.ne.s32.totalorder %s228, %s230
      %p234 = scmp.eq.s32.totalorder %s21, 0
      %p235 = por %p233, %p234
      %p236 = scmp.ne.s32.totalorder %s228, %s230
      %p237 = scmp.eq.s32.totalorder %s26, 1
      %p238 = por %p236, %p237
      %p239 = scmp.ne.s32.totalorder %s230, %s231
      %p240 = scmp.eq.s32.totalorder %s26, 0
      %p241 = por %p239, %p240
      %p242 = scmp.ne.s32.totalorder %s230, %s231
      %p243 = scmp.eq.s32.totalorder %s27, 1
      %p244 = por %p242, %p243
      %p246 = scmp.ne.s32.totalorder %s231, %s245
      %p247 = scmp.eq.s32.totalorder %s27, 0
      %p248 = por %p246, %p247
      %s250 = sadd.s32 %s249, 1
      %p253 = scmp.eq.s32.totalorder %s21, 1
      %p254 = scmp.ne.s32.totalorder %s249, %s251
      %p255 = scmp.eq.s32.totalorder %s21, 0
      %p256 = por %p254, %p255
      %p257 = scmp.ne.s32.totalorder %s249, %s251
      %p258 = scmp.eq.s32.totalorder %s26, 1
      %p259 = por %p257, %p258
      %p260 = scmp.ne.s32.totalorder %s251, %s252
      %p261 = scmp.eq.s32.totalorder %s26, 0
      %p262 = por %p260, %p261
      %p263 = scmp.ne.s32.totalorder %s251, %s252
      %p264 = scmp.eq.s32.totalorder %s27, 1
      %p265 = por %p263, %p264
      %p267 = scmp.ne.s32.totalorder %s252, %s266
      %p268 = scmp.eq.s32.totalorder %s27, 0
      %p269 = por %p267, %p268
      %s271 = sadd.s32 %s270, 1
      %p274 = scmp.eq.s32.totalorder %s21, 1
      %p275 = scmp.ne.s32.totalorder %s270, %s272
      %p276 = scmp.eq.s32.totalorder %s21, 0
      %p277 = por %p275, %p276
      %p278 = scmp.ne.s32.totalorder %s270, %s272
      %p279 = scmp.eq.s32.totalorder %s26, 1
      %p280 = por %p278, %p279
      %p281 = scmp.ne.s32.totalorder %s272, %s273
      %p282 = scmp.eq.s32.totalorder %s26, 0
      %p283 = por %p281, %p282
      %p284 = scmp.ne.s32.totalorder %s272, %s273
      %p285 = scmp.eq.s32.totalorder %s27, 1
      %p286 = por %p284, %p285
      %p288 = scmp.ne.s32.totalorder %s273, %s287
      %p289 = scmp.eq.s32.totalorder %s27, 0
      %p290 = por %p288, %p289
      %s291 = ssub.s32 %s21, %s28
      %p292 = scmp.eq.s32.totalorder %s291, 0
      %s294 = sadd.s32 %s293, 1
      %s295 = scalar_select %p292, %s293, %s294
      %p298 = pneg %p292
      %p299 = scmp.eq.s32.totalorder %s21, 1
      %p300 = por %p298, %p299
      %p301 = scmp.ne.s32.totalorder %s293, %s296
      %p302 = scmp.eq.s32.totalorder %s21, 0
      %p303 = por %p301, %p302
      %p304 = scmp.ne.s32.totalorder %s293, %s296
      %p305 = scmp.eq.s32.totalorder %s26, 1
      %p306 = por %p304, %p305
      %p307 = scmp.ne.s32.totalorder %s296, %s297
      %p308 = scmp.eq.s32.totalorder %s26, 0
      %p309 = por %p307, %p308
      %p310 = scmp.ne.s32.totalorder %s296, %s297
      %p311 = scmp.eq.s32.totalorder %s27, 1
      %p312 = por %p310, %p311
      %p314 = scmp.ne.s32.totalorder %s297, %s313
      %p315 = scmp.eq.s32.totalorder %s27, 0
      %p316 = por %p314, %p315
      %p317 = scmp.le.s32.totalorder 1, %s21
      %p318 = scmp.lt.s32.totalorder %s21, 3
      %p319 = pnand %p317, %p318
      %p320 = pneg %p319
      // Predicated region
      $region9: #{tpu_custom_call.1} parent=5 // pred_check
        _
      $region10: #{tpu_custom_call.1} parent=5 // pred_check_branch
        %322 = sbr.rel (%p319) target = $region12
      $region11: #{tpu_custom_call.1} parent=5 // pred_region
        %s323 = ssub.s32 %s21, 1
        // Predicated region
        $region13: #{tpu_custom_call.1} parent=11 // pred_check
          %p324 = pneg %p94
        $region14: #{tpu_custom_call.1} parent=11 // pred_check_branch
          %326 = sbr.rel (%p324) target = $region16
        $region15: #{tpu_custom_call.1} parent=11 // pred_region
          _
        $region16: #{tpu_custom_call.1} parent=11 // pred_fallthru
          _
        // Predicated region
        $region17: #{tpu_custom_call.1} parent=11 // pred_check
          %p327 = pneg %p115
        $region18: #{tpu_custom_call.1} parent=11 // pred_check_branch
          %329 = sbr.rel (%p327) target = $region20
        $region19: #{tpu_custom_call.1} parent=11 // pred_region
          _
        $region20: #{tpu_custom_call.1} parent=11 // pred_fallthru
          _
        // Predicated region
        $region21: #{tpu_custom_call.1} parent=11 // pred_check
          %p330 = pneg %p136
        $region22: #{tpu_custom_call.1} parent=11 // pred_check_branch
          %332 = sbr.rel (%p330) target = $region24
        $region23: #{tpu_custom_call.1} parent=11 // pred_region
          _
        $region24: #{tpu_custom_call.1} parent=11 // pred_fallthru
          _
        // Predicated region
        $region25: #{tpu_custom_call.1} parent=11 // pred_check
          %p333 = pneg %p157
        $region26: #{tpu_custom_call.1} parent=11 // pred_check_branch
          %335 = sbr.rel (%p333) target = $region28
        $region27: #{tpu_custom_call.1} parent=11 // pred_region
          _
        $region28: #{tpu_custom_call.1} parent=11 // pred_fallthru
          _
        // Predicated region
        $region29: #{tpu_custom_call.1} parent=11 // pred_check
          %p336 = pneg %p178
        $region30: #{tpu_custom_call.1} parent=11 // pred_check_branch
          %338 = sbr.rel (%p336) target = $region32
        $region31: #{tpu_custom_call.1} parent=11 // pred_region
          _
        $region32: #{tpu_custom_call.1} parent=11 // pred_fallthru
          _
        // Predicated region
        $region33: #{tpu_custom_call.1} parent=11 // pred_check
          %p339 = pneg %p199
        $region34: #{tpu_custom_call.1} parent=11 // pred_check_branch
          %341 = sbr.rel (%p339) target = $region36
        $region35: #{tpu_custom_call.1} parent=11 // pred_region
          _
        $region36: #{tpu_custom_call.1} parent=11 // pred_fallthru
          _
        // Predicated region
        $region37: #{tpu_custom_call.1} parent=11 // pred_check
          %p342 = pneg %p220
        $region38: #{tpu_custom_call.1} parent=11 // pred_check_branch
          %344 = sbr.rel (%p342) target = $region40
        $region39: #{tpu_custom_call.1} parent=11 // pred_region
          _
        $region40: #{tpu_custom_call.1} parent=11 // pred_fallthru
          _
        // Predicated region
        $region41: #{tpu_custom_call.1} parent=11 // pred_check
          %p345 = pneg %p241
        $region42: #{tpu_custom_call.1} parent=11 // pred_check_branch
          %347 = sbr.rel (%p345) target = $region44
        $region43: #{tpu_custom_call.1} parent=11 // pred_region
          _
        $region44: #{tpu_custom_call.1} parent=11 // pred_fallthru
          _
        // Predicated region
        $region45: #{tpu_custom_call.1} parent=11 // pred_check
          %p348 = pneg %p262
        $region46: #{tpu_custom_call.1} parent=11 // pred_check_branch
          %350 = sbr.rel (%p348) target = $region48
        $region47: #{tpu_custom_call.1} parent=11 // pred_region
          _
        $region48: #{tpu_custom_call.1} parent=11 // pred_fallthru
          _
        // Predicated region
        $region49: #{tpu_custom_call.1} parent=11 // pred_check
          %p351 = pneg %p283
        $region50: #{tpu_custom_call.1} parent=11 // pred_check_branch
          %353 = sbr.rel (%p351) target = $region52
        $region51: #{tpu_custom_call.1} parent=11 // pred_region
          _
        $region52: #{tpu_custom_call.1} parent=11 // pred_fallthru
          _
      $region12: #{tpu_custom_call.1} parent=5 // pred_fallthru
        _
      %p354 = scmp.lt.s32.totalorder %s21, 2
      // Predicated region
      $region53: #{tpu_custom_call.1} parent=5 // pred_check
        %p355 = pneg %p354
      $region54: #{tpu_custom_call.1} parent=5 // pred_check_branch
        %357 = sbr.rel (%p355) target = $region56
      $region55: #{tpu_custom_call.1} parent=5 // pred_region
        // Predicated region
        $region57: #{tpu_custom_call.1} parent=55 // pred_check
          %p358 = pneg %p41
        $region58: #{tpu_custom_call.1} parent=55 // pred_check_branch
          %360 = sbr.rel (%p358) target = $region60
        $region59: #{tpu_custom_call.1} parent=55 // pred_region
          %p361 = scmp.lt.s32.totalorder %s21, 1
          %s362 = scalar_select %p361, %s21, 1
          %s363 = smul.addr %s362, 26
          %s364 = smul.addr %s363, 8
          %s365 = scalar_lea.vmem %s0, %s364
        $region60: #{tpu_custom_call.1} parent=55 // pred_fallthru
          _
        // Predicated region
        $region61: #{tpu_custom_call.1} parent=55 // pred_check
          %p366 = pneg %p67
        $region62: #{tpu_custom_call.1} parent=55 // pred_check_branch
          %368 = sbr.rel (%p366) target = $region64
        $region63: #{tpu_custom_call.1} parent=55 // pred_region
          %p369 = scmp.lt.s32.totalorder %s21, 1
          %s370 = scalar_select %p369, %s21, 1
          %s371 = smul.addr %s370, 10
          %s372 = smul.addr %s371, 8
          %s373 = scalar_lea.vmem %s1, %s372
        $region64: #{tpu_custom_call.1} parent=55 // pred_fallthru
          _
      $region56: #{tpu_custom_call.1} parent=5 // pred_fallthru
        _
      %p374 = scmp.le.s32.totalorder 1, %s21
      %p375 = scmp.lt.s32.totalorder %s21, 3
      %p376 = pnand %p374, %p375
      %p377 = pneg %p376
      // Predicated region
      $region65: #{tpu_custom_call.1} parent=5 // pred_check
        _
      $region66: #{tpu_custom_call.1} parent=5 // pred_check_branch
        %379 = sbr.rel (%p376) target = $region68
      $region67: #{tpu_custom_call.1} parent=5 // pred_region
        %s380 = ssub.s32 %s21, 1
        %p381 = scmp.lt.s32.totalorder %s26, 1
        %s382 = scalar_select %p381, %s26, 1
        %s383 = smul.addr %s382, 26
        %s384 = smul.addr %s383, 8
        %s385 = scalar_lea.vmem %s0, %s384
        %p386 = pneg %p47
        %p387 = pneg %p44
        %p388 = scmp.lt.s32.totalorder %s26, 1
        %s389 = scalar_select %p388, %s26, 1
        %s390 = smul.addr %s389, 10
        %s391 = smul.addr %s390, 8
        %s392 = scalar_lea.vmem %s1, %s391
        %p393 = pneg %p73
        %p394 = pneg %p70
        %p395 = pneg %p94
        %p396 = pneg %p91
        %p397 = pneg %p115
        %p398 = pneg %p112
        %p399 = pneg %p136
        %p400 = pneg %p133
        %p401 = pneg %p157
        %p402 = pneg %p154
        %p403 = pneg %p178
        %p404 = pneg %p175
        %p405 = pneg %p199
        %p406 = pneg %p196
        %p407 = pneg %p220
        %p408 = pneg %p217
        %p409 = pneg %p241
        %p410 = pneg %p238
        %p411 = pneg %p262
        %p412 = pneg %p259
        %p413 = pneg %p283
        %p414 = pneg %p280
        %p415 = pneg %p309
        %p416 = pneg %p306
        %s417 = sand.u32 %s296, 1
        %s418 = scalar_lea.sflag [#allocation3], %s417
        %s419 = sand.u32 %s296, 1
        %s420 = smul.addr %s419, 8
        %s421 = scalar_lea.vmem [#allocation2], %s420
        %p422 = scmp.lt.s32.totalorder %s26, 1
        %s423 = scalar_select %p422, %s26, 1
        %s424 = smul.addr %s423, 26
        %s425 = smul.addr %s424, 8
        %s426 = scalar_lea.vmem %s0, %s425
        %p427 = scmp.lt.s32.totalorder %s26, 1
        %s428 = scalar_select %p427, %s26, 1
        %s429 = smul.addr %s428, 10
        %s430 = smul.addr %s429, 8
        %s431 = scalar_lea.vmem %s1, %s430
        %v432 = vld [vmem:[%s2] sm:$0xf]
        %v433 = vld [vmem:[%s426] sm:$0xff]
        %v434 = vld [vmem:[%s426 + $0x8] sm:$0xff]
        %v435 = vld [vmem:[%s426 + $0x10] sm:$0xff]
        %v436 = vld [vmem:[%s426 + $0x18] sm:$0xff]
        %v437 = vld [vmem:[%s426 + $0x20] sm:$0xff]
        %v438 = vld [vmem:[%s426 + $0x28] sm:$0xff]
        %v439 = vld [vmem:[%s426 + $0x30] sm:$0xff]
        %v440 = vld [vmem:[%s426 + $0x38] sm:$0xff]
        %v441 = vld [vmem:[%s426 + $0x40] sm:$0xff]
        %v442 = vld [vmem:[%s426 + $0x48] sm:$0xff]
        %v443 = vld [vmem:[%s426 + $0x50] sm:$0xff]
        %v444 = vld [vmem:[%s426 + $0x58] sm:$0xff]
        %v445 = vld [vmem:[%s426 + $0x60] sm:$0xff]
        %v446 = vld [vmem:[%s426 + $0x68] sm:$0xff]
        %v447 = vld [vmem:[%s426 + $0x70] sm:$0xff]
        %v448 = vld [vmem:[%s426 + $0x78] sm:$0xff]
        %v449 = vld [vmem:[%s426 + $0x80] sm:$0xff]
        %v450 = vld [vmem:[%s426 + $0x88] sm:$0xff]
        %v451 = vld [vmem:[%s426 + $0x90] sm:$0xff]
        %v452 = vld [vmem:[%s426 + $0x98] sm:$0xff]
        %v453 = vld [vmem:[%s426 + $0xa0] sm:$0xff]
        %v454 = vld [vmem:[%s426 + $0xa8] sm:$0xff]
        %v455 = vld [vmem:[%s426 + $0xb0] sm:$0xff]
        %v456 = vld [vmem:[%s426 + $0xb8] sm:$0xff]
        %v457 = vld [vmem:[%s426 + $0xc0] sm:$0xf]
        %v458 = vld [vmem:[%s426 + $0xc8] sm:$0xf]
        %v459 = vld [vmem:[%s3] sm:$0xf]
        %461 = vset.pattern.permute.xlu0 0
        %462 = vperm.xlu0 %461, %v459
        %v463 = vpop.permute.xlu0 %462
        %vm465 = vcmask 818176
        %v467 = vsel %vm465, %v432, 0
        %vm469 = vcmask 1043456
        %v471 = vsel %vm469, %v457, 0
        %v474 = vsel %vm469, %v458, 0
        %476 = vmatpush.msra.mxu0 0.0
        %477 = vmatpush.msra.mxu0 0.0
        %478 = vmatpush.msra.mxu0 0.0
        %479 = vmatpush.msra.mxu0 %v471
        %480 = vmatpush.msra.mxu0 %v455
        %481 = vmatpush.msra.mxu0 %v453
        %482 = vmatpush.msra.mxu0 %v451
        %483 = vmatpush.msra.mxu0 %v449
        %484 = vmatpush.msra.mxu0 %v447
        %485 = vmatpush.msra.mxu0 %v445
        %486 = vmatpush.msra.mxu0 %v443
        %487 = vmatpush.msra.mxu0 %v441
        %488 = vmatpush.msra.mxu0 %v439
        %489 = vmatpush.msra.mxu0 %v437
        %490 = vmatpush.msra.mxu0 %v435
        %491 = vmatpush.msra.mxu0 %v433
        %492 = vmatmul.f32.gmra.mxu0 %v467
        %v493 = vpop.f32.mrf.mxu0
        %v494 = vadd.f32 %v463, %v493
        %495 = vdwg.mxu0
        %496 = vmatpush.msra.mxu0 0.0
        %497 = vmatpush.msra.mxu0 0.0
        %498 = vmatpush.msra.mxu0 0.0
        %499 = vmatpush.msra.mxu0 %v474
        %500 = vmatpush.msra.mxu0 %v456
        %501 = vmatpush.msra.mxu0 %v454
        %502 = vmatpush.msra.mxu0 %v452
        %503 = vmatpush.msra.mxu0 %v450
        %504 = vmatpush.msra.mxu0 %v448
        %505 = vmatpush.msra.mxu0 %v446
        %506 = vmatpush.msra.mxu0 %v444
        %507 = vmatpush.msra.mxu0 %v442
        %508 = vmatpush.msra.mxu0 %v440
        %509 = vmatpush.msra.mxu0 %v438
        %510 = vmatpush.msra.mxu0 %v436
        %511 = vmatpush.msra.mxu0 %v434
        %512 = vmatmul.f32.gmra.mxu0 %v467
        %v513 = vpop.f32.mrf.mxu0
        %v514 = vadd.f32 %v463, %v513
        %515 = vdwg.mxu0
        %v516 = vmax.f32 %v494, 0.0
        %v517 = vmax.f32 %v514, 0.0
        %v518 = vld [vmem:[%s4] sm:$0xf]
        %v519 = vld [vmem:[%s431] sm:$0xff]
        %v520 = vld [vmem:[%s431 + $0x8] sm:$0xff]
        %v521 = vld [vmem:[%s431 + $0x10] sm:$0xff]
        %v522 = vld [vmem:[%s431 + $0x18] sm:$0xff]
        %v523 = vld [vmem:[%s431 + $0x20] sm:$0xff]
        %v524 = vld [vmem:[%s431 + $0x28] sm:$0xff]
        %v525 = vld [vmem:[%s431 + $0x30] sm:$0xff]
        %v526 = vld [vmem:[%s431 + $0x38] sm:$0xff]
        %v527 = vld [vmem:[%s431 + $0x40] sm:$0xf]
        %v528 = vld [vmem:[%s431 + $0x48] sm:$0xf]
        %v529 = vld [vmem:[%s5] sm:$0xf]
        %531 = vset.pattern.permute.xlu0 0
        %532 = vperm.xlu0 %531, %v529
        %v533 = vpop.permute.xlu0 %532
        %vm535 = vcmask 293888
        %v537 = vsel %vm535, %v518, 0
        %v540 = vsel %vm469, %v527, 0
        %v543 = vsel %vm469, %v528, 0
        %545 = vmatpush.msra.mxu0 0.0
        %546 = vmatpush.msra.mxu0 0.0
        %547 = vmatpush.msra.mxu0 0.0
        %548 = vmatpush.msra.mxu0 0.0
        %549 = vmatpush.msra.mxu0 0.0
        %550 = vmatpush.msra.mxu0 0.0
        %551 = vmatpush.msra.mxu0 0.0
        %552 = vmatpush.msra.mxu0 0.0
        %553 = vmatpush.msra.mxu0 0.0
        %554 = vmatpush.msra.mxu0 0.0
        %555 = vmatpush.msra.mxu0 0.0
        %556 = vmatpush.msra.mxu0 %v540
        %557 = vmatpush.msra.mxu0 %v525
        %558 = vmatpush.msra.mxu0 %v523
        %559 = vmatpush.msra.mxu0 %v521
        %560 = vmatpush.msra.mxu0 %v519
        %561 = vmatmul.f32.gmra.mxu0 %v537
        %v562 = vpop.f32.mrf.mxu0
        %v563 = vadd.f32 %v533, %v562
        %564 = vdwg.mxu0
        %565 = vmatpush.msra.mxu0 0.0
        %566 = vmatpush.msra.mxu0 0.0
        %567 = vmatpush.msra.mxu0 0.0
        %568 = vmatpush.msra.mxu0 0.0
        %569 = vmatpush.msra.mxu0 0.0
        %570 = vmatpush.msra.mxu0 0.0
        %571 = vmatpush.msra.mxu0 0.0
        %572 = vmatpush.msra.mxu0 0.0
        %573 = vmatpush.msra.mxu0 0.0
        %574 = vmatpush.msra.mxu0 0.0
        %575 = vmatpush.msra.mxu0 0.0
        %576 = vmatpush.msra.mxu0 %v543
        %577 = vmatpush.msra.mxu0 %v526
        %578 = vmatpush.msra.mxu0 %v524
        %579 = vmatpush.msra.mxu0 %v522
        %580 = vmatpush.msra.mxu0 %v520
        %581 = vmatmul.f32.gmra.mxu0 %v537
        %v582 = vpop.f32.mrf.mxu0
        %v583 = vadd.f32 %v533, %v582
        %584 = vdwg.mxu0
        %v585 = vmax.f32 %v563, 0.0
        %v586 = vmax.f32 %v583, 0.0
        %v587 = vadd.f32 %v516, %v585
        %v588 = vadd.f32 %v517, %v586
        %v589 = vsel %vm469, %v587, 0.0
        %v590 = vsel %vm469, %v588, 0.0
        %v591 = vadd.f32 %v589, %v590
        %592 = vadd.xlane.f32.xlu0 %v591
        %v593 = vpop.xlane.xlu0 %592
        %v594 = vmul.f32 %v593, 0.00390625
        %v595 = vld [vmem:[%s6] sm:$0x3]
        %v596 = vld [vmem:[%s7] sm:$0x3]
        %vm597 = vcmask 31744
        %v599 = vsel %vm597, %v595, 0
        %v602 = vsel %vm469, %v594, 0
        %604 = vmatpush.msra.mxu0 0.0
        %605 = vmatpush.msra.mxu0 0.0
        %606 = vmatpush.msra.mxu0 0.0
        %607 = vmatpush.msra.mxu0 0.0
        %608 = vmatpush.msra.mxu0 0.0
        %609 = vmatpush.msra.mxu0 0.0
        %610 = vmatpush.msra.mxu0 0.0
        %611 = vmatpush.msra.mxu0 0.0
        %612 = vmatpush.msra.mxu0 0.0
        %613 = vmatpush.msra.mxu0 0.0
        %614 = vmatpush.msra.mxu0 0.0
        %615 = vmatpush.msra.mxu0 0.0
        %616 = vmatpush.msra.mxu0 0.0
        %617 = vmatpush.msra.mxu0 0.0
        %618 = vmatpush.msra.mxu0 0.0
        %619 = vmatpush.msra.mxu0 %v602
        %620 = vmatmul.f32.gmra.mxu0 %v599
        %v621 = vpop.f32.mrf.mxu0
        %v622 = vadd.f32 %v596, %v621
        %623 = vdwg.mxu0
        %v624 = vmax.f32 %v622, 0.0
        %v625 = vld [vmem:[%s8] sm:$0xf]
        %v626 = vld [vmem:[%s9] sm:$0xf]
        %vm627 = vcmask 15360
        %v629 = vsel %vm627, %v625, 0
        %vm631 = vcmask 1041408
        %v633 = vsel %vm631, %v624, 0
        %635 = vmatpush.msra.mxu0 0.0
        %636 = vmatpush.msra.mxu0 0.0
        %637 = vmatpush.msra.mxu0 0.0
        %638 = vmatpush.msra.mxu0 0.0
        %639 = vmatpush.msra.mxu0 0.0
        %640 = vmatpush.msra.mxu0 0.0
        %641 = vmatpush.msra.mxu0 0.0
        %642 = vmatpush.msra.mxu0 0.0
        %643 = vmatpush.msra.mxu0 0.0
        %644 = vmatpush.msra.mxu0 0.0
        %645 = vmatpush.msra.mxu0 0.0
        %646 = vmatpush.msra.mxu0 0.0
        %647 = vmatpush.msra.mxu0 0.0
        %648 = vmatpush.msra.mxu0 0.0
        %649 = vmatpush.msra.mxu0 0.0
        %650 = vmatpush.msra.mxu0 %v633
        %651 = vmatmul.f32.gmra.mxu0 %v629
        %v652 = vpop.f32.mrf.mxu0
        %v653 = vadd.f32 %v626, %v652
        %654 = vdwg.mxu0
        %v655 = vld [vmem:[%s10] sm:$0xf]
        %v656 = vld [vmem:[%s11] sm:$0xf]
        %v658 = vsel %vm627, %v655, 0
        %660 = vmatpush.msra.mxu0 0.0
        %661 = vmatpush.msra.mxu0 0.0
        %662 = vmatpush.msra.mxu0 0.0
        %663 = vmatpush.msra.mxu0 0.0
        %664 = vmatpush.msra.mxu0 0.0
        %665 = vmatpush.msra.mxu0 0.0
        %666 = vmatpush.msra.mxu0 0.0
        %667 = vmatpush.msra.mxu0 0.0
        %668 = vmatpush.msra.mxu0 0.0
        %669 = vmatpush.msra.mxu0 0.0
        %670 = vmatpush.msra.mxu0 0.0
        %671 = vmatpush.msra.mxu0 0.0
        %672 = vmatpush.msra.mxu0 0.0
        %673 = vmatpush.msra.mxu0 0.0
        %674 = vmatpush.msra.mxu0 0.0
        %675 = vmatpush.msra.mxu0 %v633
        %676 = vmatmul.f32.gmra.mxu0 %v658
        %v677 = vpop.f32.mrf.mxu0
        %v678 = vadd.f32 %v656, %v677
        %679 = vdwg.mxu0
        %v680 = vmax.f32 %v653, %v678
        %v681 = vsub.f32 %v653, %v680
        %v682 = vmul.f32 %v681, 1.442695
        %v683 = vpow.pop %v682
        %v684 = vsub.f32 %v678, %v680
        %v685 = vmul.f32 %v684, 1.442695
        %v686 = vpow.pop %v685
        %v687 = vadd.f32 %v683, %v686
        %v688 = vrcp.pop %v687
        %v689 = vmul.f32 %v683, %v688
        %v690 = vmul.f32 %v686, %v688
        %692 = vset.pattern.permute.xlu0 0
        %693 = vperm.xlu0 %692, %v689
        %v694 = vpop.permute.xlu0 %693
        %v696 = vmul.f32 %v694, %v516
        %v697 = vmul.f32 %v694, %v517
        %699 = vset.pattern.permute.xlu0 0
        %700 = vperm.xlu0 %699, %v690
        %v701 = vpop.permute.xlu0 %700
        %v703 = vmul.f32 %v701, %v585
        %v704 = vmul.f32 %v701, %v586
        %v705 = vadd.f32 %v696, %v703
        %v706 = vadd.f32 %v697, %v704
        %v709 = vrot.slane %v706, 4
        %v710 = vsel %vm469, %v705, %v709
        %712 = vst [vmem:[%s421] sm:$0xff] %v710
        %s713 = sand.u32 %s296, 1
        %s714 = scalar_lea.sflag [#allocation3], %s713
        %s715 = sand.u32 %s296, 1
        %s716 = smul.addr %s715, 8
        %s717 = scalar_lea.vmem [#allocation2], %s716
        // Predicated region
        $region69: #{tpu_custom_call.1} parent=67 // pred_check
          %p718 = pneg %p306
        $region70: #{tpu_custom_call.1} parent=67 // pred_check_branch
          %720 = sbr.rel (%p718) target = $region72
        $region71: #{tpu_custom_call.1} parent=67 // pred_region
          %722 = vsyncadd %s714, 0
          %s723 = smul.addr %s26, 2
          %s724 = smul.addr %s723, 4
          %s725 = scalar_lea.hbm %s12, %s724
          %s727 = sshll.u32 %s717, 4
          %s728 = int_to_ptr.vmem [resolvable:$true] %s727
          %s729 = sshll.u32 %s725, 4
          %s730 = int_to_ptr.hbm [resolvable:$true] %s729
          %732 = dma.vmem_to_hbm [thread:$0]  %s728, 128, %s730, %s714
        $region72: #{tpu_custom_call.1} parent=67 // pred_fallthru
          _
      $region68: #{tpu_custom_call.1} parent=5 // pred_fallthru
        _
      %p733 = scmp.le.s32.totalorder 2, %s21
      // Predicated region
      $region73: #{tpu_custom_call.1} parent=5 // pred_check
        %p734 = pneg %p733
      $region74: #{tpu_custom_call.1} parent=5 // pred_check_branch
        %736 = sbr.rel (%p734) target = $region76
      $region75: #{tpu_custom_call.1} parent=5 // pred_region
        %s737 = ssub.s32 %s21, 2
        // Predicated region
        $region77: #{tpu_custom_call.1} parent=75 // pred_check
          %p738 = pneg %p312
        $region78: #{tpu_custom_call.1} parent=75 // pred_check_branch
          %740 = sbr.rel (%p738) target = $region80
        $region79: #{tpu_custom_call.1} parent=75 // pred_region
          %s741 = sand.u32 %s297, 1
          %s742 = scalar_lea.sflag [#allocation3], %s741
          %s743 = sand.u32 %s297, 1
          %s744 = smul.addr %s743, 8
          %s745 = scalar_lea.vmem [#allocation2], %s744
          %747 = dma.done %s742, 128
        $region80: #{tpu_custom_call.1} parent=75 // pred_fallthru
          _
      $region76: #{tpu_custom_call.1} parent=5 // pred_fallthru
        _
    $region6: #{tpu_custom_call.1} parent=1 // loop_footer
      %s25 = sadd.s32 1, %s21
    $region7: #{tpu_custom_call.1} parent=1 // loop_footer_branch
      %20 = sbr.rel target = $region3
    $region8: #{tpu_custom_call.1} parent=1 // loop_exit
      _
    %748 = vsyncpa [#allocation3], 1
    %s749 = scalar_lea.sflag [#allocation3], 1
    %750 = vsyncpa %s749, 1

</llo_original>
